<compile_context>
chip_gen: v5e
topology: v5e:2x2
jax: 0.10.0
libtpu: 0.0.40
codegen_flags: <defaults>
</compile_context>

<pallas_src>
import functools
import math

import jax
import jax.numpy as jnp
from jax.experimental import pallas as pl
from jax.experimental.pallas import tpu as pltpu

_LOG_LO = math.log(1e-8)          # clip(pt, 1e-8, 1-1e-8) applied in log space
_LOG_HI = math.log(1.0 - 1e-8)


def _focal_kernel(*refs, gamma, hw, tile, n_inner, has_cw):
    if has_cw:
        logit_ref, target_ref, cw_ref, out_ref = refs
    else:
        logit_ref, target_ref, out_ref = refs
        cw_ref = None

    o = pl.program_id(1)
    j = pl.program_id(2)

    @pl.when(j == 0)
    def _():
        out_ref[...] = jnp.zeros_like(out_ref)

    # TODO(synk): for bf16 inputs on v6e/v7x the class-axis max/sub/exp could stay
    # in bf16 (halving (C,T) temp footprint); kept in f32 here for all generations.
    x = logit_ref[...].astype(jnp.float32)          # (1, C, T)
    tgt = target_ref[...]                           # (1, 1, T) int32
    num_classes = x.shape[1]

    # Lane validity for the ragged last tile / overhang grid steps (no host-side pad).
    p = o * n_inner + j                              # un-clamped pixel-tile index
    lane = jax.lax.broadcasted_iota(jnp.int32, tgt.shape, dimension=2)
    valid = (p * tile + lane) < hw                   # (1, 1, T) bool

    # log-softmax over the class (sublane) axis.
    m = jnp.max(x, axis=1, keepdims=True)            # (1, 1, T)
    e = jnp.exp(x - m)
    lse = jnp.log(jnp.sum(e, axis=1, keepdims=True))

    # Target-class gather (scatter_(1, target, 1.0) equivalent) without an f32 one-hot.
    ids = jax.lax.broadcasted_iota(jnp.int32, x.shape, dimension=1)
    onehot = ids == tgt                               # (1, C, T) bool
    x_t = jnp.sum(jnp.where(onehot, x, 0.0), axis=1, keepdims=True)   # target logit

    if has_cw:
        cw = cw_ref[...].astype(jnp.float32)          # (1, C, 1)
        w = jnp.sum(jnp.where(onehot, cw, 0.0), axis=1, keepdims=True)
    else:
        # Fast path: unit weight for in-range targets, zero otherwise.
        w = jnp.logical_and(tgt >= 0, tgt < num_classes).astype(jnp.float32)

    log_pt = jnp.clip(x_t - m - lse, _LOG_LO, _LOG_HI)   # == log(clip(pt))
    pt = jnp.exp(log_pt)
    one_m = 1.0 - pt
    if gamma == 2:                                    # integer-gamma fast path: pure VPU
        focus = one_m * one_m
    elif isinstance(gamma, int) and gamma >= 0:
        focus = jnp.ones_like(one_m)
        for _ in range(gamma):
            focus = focus * one_m
    else:
        focus = one_m ** gamma
    focus = jnp.clip(focus, 0.0, 2.0)

    contrib = -w * focus * log_pt                     # (1, 1, T)
    # Select (not multiply) so garbage from out-of-bounds lanes can never leak in.
    out_ref[...] += jnp.where(valid, contrib, 0.0)


def robust_focal_loss_2d(logit, target, class_weight=None, gamma=2,
                         size_average=True, max_tile_lanes=None):
    """logit: (B, C, H, W) float; target: (B, H, W) int. Softmax focal loss."""
    B, C, H, W = logit.shape
    HW = H * W
    N = B * HW

    logit_3d = logit.reshape(B, C, HW)                # free reshapes, no transpose
    target_3d = target.reshape(B, 1, HW).astype(jnp.int32)

    # ---- C-aware tile sizing (ragged edge masked in-kernel, never padded in HBM).
    cpad = ((C + 7) // 8) * 8                         # sublane padding of the class axis
    itemsize = jnp.dtype(logit.dtype).itemsize
    # Per-lane VMEM cost: 2 pipelined logit blocks + ~5 f32 (C,T) temporaries
    # + target/output blocks (each sublane-padded to 8 rows, double-buffered).
    bytes_per_lane = cpad * (2 * itemsize + 5 * 4) + 4 * 8 * 4
    budget = 24 * 1024 * 1024                         # conservative for v7x's 64 MiB VMEM
    tile = max(128, (budget // bytes_per_lane) // 128 * 128)
    tile = min(tile, 65536)
    if max_tile_lanes is not None:
        tile = min(tile, max(128, (int(max_tile_lanes) // 128) * 128))
    tile = min(tile, ((HW + 127) // 128) * 128)

    n_pix_tiles = pl.cdiv(HW, tile)
    # Outer "parallel" pixel-group axis keeps both v7x TensorCores busy even at B == 1.
    n_outer = 2 if n_pix_tiles >= 2 else 1
    n_inner = pl.cdiv(n_pix_tiles, n_outer)

    def data_map(b, o, j):
        # Clamp so overhang grid steps (o*n_inner + j >= n_pix_tiles) re-read the last
        # block; their contribution is fully masked inside the kernel.
        return (b, 0, jnp.minimum(o * n_inner + j, n_pix_tiles - 1))

    in_specs = [
        pl.BlockSpec((1, C, tile), data_map),         # logits tile
        pl.BlockSpec((1, 1, tile), data_map),         # target tile
    ]
    args = [logit_3d, target_3d]
    has_cw = class_weight is not None
    if has_cw:
        cw = jnp.asarray(class_weight, dtype=jnp.float32).reshape(1, C, 1)
        in_specs.append(pl.BlockSpec((1, C, 1), lambda b, o, j: (0, 0, 0)))
        args.append(cw)

    kernel = functools.partial(_focal_kernel, gamma=gamma, hw=HW, tile=tile,
                               n_inner=n_inner, has_cw=has_cw)

    partial_sums = pl.pallas_call(
        kernel,
        out_shape=jax.ShapeDtypeStruct((B * n_outer, 1, tile), jnp.float32),
        grid_spec=pltpu.PrefetchScalarGridSpec(
            num_scalar_prefetch=0,
            grid=(B, n_outer, n_inner),
            in_specs=in_specs,
            out_specs=pl.BlockSpec((1, 1, tile),
                                   lambda b, o, j: (b * n_outer + o, 0, 0)),
        ),
        compiler_params=pltpu.CompilerParams(
            dimension_semantics=("parallel", "parallel", "arbitrary"),
            vmem_limit_bytes=48 * 1024 * 1024),
    )(*args)

    total = jnp.sum(partial_sums)                     # epilogue reduce in XLA
    if size_average:
        return (total / jnp.float32(N)).reshape(())
    # TODO(synk): size_average=False returns the per-pixel batch_loss tensor in the
    # reference; only the summed scalar loss is materialized here.
    return total.reshape(())


def _reference_jax(logit, target, class_weight=None, gamma=2):
    B, C, H, W = logit.shape
    x = jnp.transpose(logit, (0, 2, 3, 1)).reshape(-1, C).astype(jnp.float32)
    t = target.reshape(-1)
    p = jax.nn.softmax(x, axis=1)
    pt = jnp.take_along_axis(p, t[:, None], axis=1)[:, 0]
    pt = jnp.clip(pt, 1e-8, 1 - 1e-8)
    focus = jnp.clip((1 - pt) ** gamma, 0, 2)
    if class_weight is None:
        w = jnp.ones_like(pt)
    else:
        w = jnp.asarray(class_weight, jnp.float32)[t]
    return jnp.mean(-w * focus * jnp.log(pt))


if __name__ == "__main__":
    key = jax.random.PRNGKey(0)
    k1, k2, k3, k4 = jax.random.split(key, 4)

    # Case 1: aligned spatial size, module defaults (no class_weight, gamma=2).
    B, C, H, W = 2, 4, 16, 16
    logit = jax.random.normal(k1, (B, C, H, W), dtype=jnp.float32)
    target = jax.random.randint(k2, (B, H, W), 0, C, dtype=jnp.int32)
    loss = jax.block_until_ready(robust_focal_loss_2d(logit, target, gamma=2))
    ref = _reference_jax(logit, target, gamma=2)
    assert jnp.allclose(loss, ref, rtol=1e-5, atol=1e-6), (loss, ref)

    # Case 2: ragged spatial size (HW=300), multi-tile megacore split, class weights.
    B2, C2, H2, W2 = 1, 4, 15, 20
    cw = [0.5, 1.0, 1.5, 2.0]
    logit2 = jax.random.normal(k3, (B2, C2, H2, W2), dtype=jnp.float32)
    target2 = jax.random.randint(k4, (B2, H2, W2), 0, C2, dtype=jnp.int32)
    loss2 = jax.block_until_ready(
        robust_focal_loss_2d(logit2, target2, class_weight=cw, gamma=2,
                             max_tile_lanes=128))
    ref2 = _reference_jax(logit2, target2, class_weight=cw, gamma=2)
    assert jnp.allclose(loss2, ref2, rtol=1e-5, atol=1e-6), (loss2, ref2)

    print("KERNEL_OK")
</pallas_src>

<mosaic_0001>
module attributes {stable_mosaic.version = 11 : i64} {
  func.func @_focal_kernel(%arg0: i32, %arg1: i32, %arg2: i32, %arg3: memref<1x4x256xf32, #tpu.memory_space<vmem>>, %arg4: memref<1x1x256xi32, #tpu.memory_space<vmem>>, %arg5: memref<1x1x256xf32, #tpu.memory_space<vmem>>) attributes {dimension_semantics = [#tpu.dimension_semantics<parallel>, #tpu.dimension_semantics<parallel>, #tpu.dimension_semantics<arbitrary>], iteration_bounds = array<i64: 2, 1, 1>, scalar_prefetch = 0 : i64, scratch_operands = 0 : i64, tpu.core_type = #tpu.core_type<tc>, window_params = [{transform_indices = @transform_0, window_bounds = array<i64: 1, 4, 256>}, {transform_indices = @transform_1, window_bounds = array<i64: 1, 1, 256>}, {transform_indices = @transform_2, window_bounds = array<i64: 1, 1, 256>}]} {
    %c0_i32 = arith.constant 0 : i32
    %0 = arith.cmpi eq, %arg2, %c0_i32 : i32
    %1 = arith.extui %0 : i1 to i32
    %c0_i32_0 = arith.constant 0 : i32
    %2 = arith.cmpi ne, %1, %c0_i32_0 : i32
    scf.if %2 {
      %cst_24 = arith.constant 0.000000e+00 : f32
      %58 = vector.broadcast %cst_24 : f32 to vector<1x1x256xf32>
      %c0_25 = arith.constant 0 : index
      %c0_26 = arith.constant 0 : index
      %c0_27 = arith.constant 0 : index
      %59 = vector.load %arg5[%c0_25, %c0_26, %c0_27] : memref<1x1x256xf32, #tpu.memory_space<vmem>>, vector<1x1x256xf32>
      tpu.vector_store %arg5[%c0_25, %c0_26, %c0_27], %58 {strides = array<i32>} : memref<1x1x256xf32, #tpu.memory_space<vmem>>, vector<1x1x256xf32>,
    } else {
    }
    %c0 = arith.constant 0 : index
    %c0_1 = arith.constant 0 : index
    %c0_2 = arith.constant 0 : index
    %3 = vector.load %arg3[%c0, %c0_1, %c0_2] : memref<1x4x256xf32, #tpu.memory_space<vmem>>, vector<1x4x256xf32>
    %c0_3 = arith.constant 0 : index
    %c0_4 = arith.constant 0 : index
    %c0_5 = arith.constant 0 : index
    %4 = vector.load %arg4[%c0_3, %c0_4, %c0_5] : memref<1x1x256xi32, #tpu.memory_space<vmem>>, vector<1x1x256xi32>
    %c1_i32 = arith.constant 1 : i32
    %5 = arith.muli %arg1, %c1_i32 : i32
    %6 = arith.addi %5, %arg2 : i32
    %7 = tpu.iota {dimensions = array<i32: 2>} : vector<1x1x256xi32>
    %c256_i32 = arith.constant 256 : i32
    %8 = arith.muli %6, %c256_i32 : i32
    %9 = vector.broadcast %8 : i32 to vector<1x1x256xi32>
    %10 = arith.addi %9, %7 : vector<1x1x256xi32>
    %c256_i32_6 = arith.constant 256 : i32
    %11 = vector.broadcast %c256_i32_6 : i32 to vector<1x1x256xi32>
    %12 = arith.cmpi slt, %10, %11 : vector<1x1x256xi32>
    %cst = arith.constant dense<0xFF800000> : vector<1x256xf32>
    %13 = vector.multi_reduction <maximumf>, %3, %cst [1] : vector<1x4x256xf32> to vector<1x256xf32>
    %14 = vector.shape_cast %13 : vector<1x256xf32> to vector<1x1x256xf32>
    %15 = vector.broadcast %14 : vector<1x1x256xf32> to vector<1x4x256xf32>
    %16 = arith.subf %3, %15 : vector<1x4x256xf32>
    %17 = math.exp %16 : vector<1x4x256xf32>
    %cst_7 = arith.constant dense<0.000000e+00> : vector<1x256xf32>
    %18 = vector.multi_reduction <add>, %17, %cst_7 [1] : vector<1x4x256xf32> to vector<1x256xf32>
    %19 = vector.shape_cast %18 : vector<1x256xf32> to vector<1x1x256xf32>
    %20 = math.log %19 : vector<1x1x256xf32>
    %21 = tpu.iota {dimensions = array<i32: 1>} : vector<1x4x256xi32>
    %22 = vector.broadcast %4 : vector<1x1x256xi32> to vector<1x4x256xi32>
    %23 = arith.cmpi eq, %21, %22 : vector<1x4x256xi32>
    %cst_8 = arith.constant 0.000000e+00 : f32
    %24 = vector.broadcast %cst_8 : f32 to vector<1x4x256xf32>
    %25 = arith.select %23, %3, %24 : vector<1x4x256xi1>, vector<1x4x256xf32>
    %cst_9 = arith.constant dense<0.000000e+00> : vector<1x256xf32>
    %26 = vector.multi_reduction <add>, %25, %cst_9 [1] : vector<1x4x256xf32> to vector<1x256xf32>
    %27 = vector.shape_cast %26 : vector<1x256xf32> to vector<1x1x256xf32>
    %c0_i32_10 = arith.constant 0 : i32
    %28 = vector.broadcast %c0_i32_10 : i32 to vector<1x1x256xi32>
    %29 = arith.cmpi sge, %4, %28 : vector<1x1x256xi32>
    %c4_i32 = arith.constant 4 : i32
    %30 = vector.broadcast %c4_i32 : i32 to vector<1x1x256xi32>
    %31 = arith.cmpi slt, %4, %30 : vector<1x1x256xi32>
    %32 = arith.andi %29, %31 : vector<1x1x256xi1>
    %33 = arith.extui %32 : vector<1x1x256xi1> to vector<1x1x256xi32>
    %34 = arith.sitofp %33 : vector<1x1x256xi32> to vector<1x1x256xf32>
    %35 = arith.subf %27, %14 : vector<1x1x256xf32>
    %36 = arith.subf %35, %20 : vector<1x1x256xf32>
    %cst_11 = arith.constant -18.420681 : f32
    %cst_12 = arith.constant -9.99999993E-9 : f32
    %37 = vector.broadcast %cst_11 : f32 to vector<1x1x256xf32>
    %38 = arith.maximumf %37, %36 : vector<1x1x256xf32>
    %39 = vector.broadcast %cst_12 : f32 to vector<1x1x256xf32>
    %40 = arith.minimumf %39, %38 : vector<1x1x256xf32>
    %41 = math.exp %40 : vector<1x1x256xf32>
    %cst_13 = arith.constant 1.000000e+00 : f32
    %42 = vector.broadcast %cst_13 : f32 to vector<1x1x256xf32>
    %43 = arith.subf %42, %41 : vector<1x1x256xf32>
    %44 = arith.mulf %43, %43 : vector<1x1x256xf32>
    %cst_14 = arith.constant 0.000000e+00 : f32
    %cst_15 = arith.constant 2.000000e+00 : f32
    %45 = vector.broadcast %cst_14 : f32 to vector<1x1x256xf32>
    %46 = arith.maximumf %45, %44 : vector<1x1x256xf32>
    %47 = vector.broadcast %cst_15 : f32 to vector<1x1x256xf32>
    %48 = arith.minimumf %47, %46 : vector<1x1x256xf32>
    %cst_16 = arith.constant 0.000000e+00 : f32
    %49 = vector.broadcast %cst_16 : f32 to vector<1x1x256xf32>
    %50 = arith.subf %49, %34 : vector<1x1x256xf32>
    %51 = arith.mulf %50, %48 : vector<1x1x256xf32>
    %52 = arith.mulf %51, %40 : vector<1x1x256xf32>
    %c0_17 = arith.constant 0 : index
    %c0_18 = arith.constant 0 : index
    %c0_19 = arith.constant 0 : index
    %53 = vector.load %arg5[%c0_17, %c0_18, %c0_19] : memref<1x1x256xf32, #tpu.memory_space<vmem>>, vector<1x1x256xf32>
    %cst_20 = arith.constant 0.000000e+00 : f32
    %54 = vector.broadcast %cst_20 : f32 to vector<1x1x256xf32>
    %55 = arith.select %12, %52, %54 : vector<1x1x256xi1>, vector<1x1x256xf32>
    %56 = arith.addf %53, %55 : vector<1x1x256xf32>
    %c0_21 = arith.constant 0 : index
    %c0_22 = arith.constant 0 : index
    %c0_23 = arith.constant 0 : index
    %57 = vector.load %arg5[%c0_21, %c0_22, %c0_23] : memref<1x1x256xf32, #tpu.memory_space<vmem>>, vector<1x1x256xf32>
    tpu.vector_store %arg5[%c0_21, %c0_22, %c0_23], %56 {strides = array<i32>} : memref<1x1x256xf32, #tpu.memory_space<vmem>>, vector<1x1x256xf32>,
    return
  }
  func.func @transform_0(%arg0: i32, %arg1: i32, %arg2: i32) -> (i32, i32, i32) {
    %c1_i32 = arith.constant 1 : i32
    %0 = arith.muli %arg1, %c1_i32 : i32
    %1 = arith.addi %0, %arg2 : i32
    %c0_i32 = arith.constant 0 : i32
    %2 = arith.minsi %1, %c0_i32 : i32
    %c0_i32_0 = arith.constant 0 : i32
    %c0_i32_1 = arith.constant 0 : i32
    return %arg0, %c0_i32_0, %2 : i32, i32, i32
  }
  func.func @transform_1(%arg0: i32, %arg1: i32, %arg2: i32) -> (i32, i32, i32) {
    %c1_i32 = arith.constant 1 : i32
    %0 = arith.muli %arg1, %c1_i32 : i32
    %1 = arith.addi %0, %arg2 : i32
    %c0_i32 = arith.constant 0 : i32
    %2 = arith.minsi %1, %c0_i32 : i32
    %c0_i32_0 = arith.constant 0 : i32
    %c0_i32_1 = arith.constant 0 : i32
    return %arg0, %c0_i32_0, %2 : i32, i32, i32
  }
  func.func @transform_2(%arg0: i32, %arg1: i32, %arg2: i32) -> (i32, i32, i32) {
    %c1_i32 = arith.constant 1 : i32
    %0 = arith.muli %arg0, %c1_i32 : i32
    %1 = arith.addi %0, %arg1 : i32
    %c0_i32 = arith.constant 0 : i32
    %c0_i32_0 = arith.constant 0 : i32
    %c0_i32_1 = arith.constant 0 : i32
    return %1, %c0_i32, %c0_i32_0 : i32, i32, i32
  }
}

</mosaic_0001>

<llo_original>
// kernel: tpu_custom_call.1
$region0: #{tpu_custom_call.1}
  #allocation0 [shape = 'u32[]', space=smem, size = 0x4, offset = 0x4, fixed_abs, tag = 'smem constant byte address 0x4 - core index']
  #allocation1 [shape = 'u32[72,128]{1,0:T(1,128)}', space=vmem, size = 0x9000, scoped, tag = 'internal scratch']
  %s0 = inlined_call_operand.hbm [shape: f32[2,4,256], index: 0, kind: input, shape index: {}]
  %s1 = inlined_call_operand.hbm [shape: s32[2,1,256], index: 1, kind: input, shape index: {}]
  %s2 = inlined_call_operand.hbm [shape: f32[2,1,256], index: 2, kind: output, shape index: {}]
  %s3 = sld [smem:[#allocation0]]
  $region53: #{tpu_custom_call.1} parent=0
    _
  %s5 = ssub.s32 1, %s3
  %s6 = scalar_select 0, %s5, %s3
  $region1: #{tpu_custom_call.1} parent=0
    #allocation2 [shape = 'u8[8192]{0}', space=vmem, size = 0x2000, scoped, tag = 'input window, operand 0']
    #allocation3 [shape = 's32[2]{0}', space=sflag, size = 0x8, scoped, tag = 'scoped memory for tpu_custom_call.1']
    #allocation4 [shape = 's32[2]{0}', space=sflag, size = 0x8, scoped, tag = 'scoped memory for tpu_custom_call.1']
    #allocation5 [shape = 'u8[2048]{0}', space=vmem, size = 0x800, scoped, tag = 'input window, operand 1']
    #allocation6 [shape = 's32[2]{0}', space=sflag, size = 0x8, scoped, tag = 'scoped memory for tpu_custom_call.1']
    #allocation7 [shape = 'u8[2048]{0}', space=vmem, size = 0x800, scoped, tag = 'output window, operand 0']
    %7 = vsyncpa [#allocation3], 0
    %s8 = scalar_lea.sflag [#allocation3], 1
    %9 = vsyncpa %s8, 0
    %10 = vsyncpa [#allocation6], 0
    %s11 = scalar_lea.sflag [#allocation6], 1
    %12 = vsyncpa %s11, 0
    %13 = vsyncpa [#allocation4], 0
    %s14 = scalar_lea.sflag [#allocation4], 1
    %15 = vsyncpa %s14, 0
    loop: start=0, step=1, limit=4
    $region2: #{tpu_custom_call.1} parent=1 // loop_pre_header
      _
    $region3: #{tpu_custom_call.1} parent=1 // loop_header
      %s17 = sphi 0, %s21
      %p18 = scmp.ge.s32.totalorder %s17, 4
      %s24 = sphi 0, %s43
      %s25 = sphi 0, %s39
      %s26 = sphi 0, %s35
      %s27 = sphi 0, %s24
      %s28 = sphi 0, %s25
      %s29 = sphi 0, %s26
      %s30 = sphi 0, %s27
      %s31 = sphi 0, %s28
      %s32 = sphi 0, %s29
      %s54 = sphi 0, %s56
      %s57 = sphi 0, %s54
      %s58 = sphi 0, %s57
      %s74 = sphi 0, %s58
      %s88 = sphi 0, %s90
      %s91 = sphi 0, %s88
      %s92 = sphi 0, %s91
      %s108 = sphi 0, %s92
      %s116 = sphi 0, %s118
      %s119 = sphi 0, %s116
      %s120 = sphi 0, %s119
      %s136 = sphi 0, %s120
    $region4: #{tpu_custom_call.1} parent=1 // loop_header_branch
      %20 = sbr.rel (%p18) target = $region8
    $region5: #{tpu_custom_call.1} parent=1 // loop_body
      %s22 = ssub.s32 %s17, 1
      %s23 = ssub.s32 %s17, 2
      %s33 = sadd.s32 1, %s26
      %p34 = scmp.ge.s32.totalorder %s33, 1
      %s35 = scalar_select %p34, 0, %s33
      %s36 = sadd.s32 1, %s25
      %s37 = scalar_select %p34, %s36, %s25
      %p38 = scmp.ge.s32.totalorder %s37, 1
      %s39 = scalar_select %p38, 0, %s37
      %s40 = sadd.s32 1, %s24
      %s41 = scalar_select %p38, %s40, %s24
      %p42 = scmp.ge.s32.totalorder %s41, 2
      %s43 = scalar_select %p42, 0, %s41
      %s44 = sadd.s32 %s25, %s26
      %p45 = scmp.lt.s32.totalorder %s44, 0
      %s46 = scalar_select %p45, %s44, 0
      %s47 = sadd.s32 %s39, %s35
      %p48 = scmp.lt.s32.totalorder %s47, 0
      %s49 = scalar_select %p48, %s47, 0
      %s50 = ssub.s32 %s24, %s43
      %s51 = ssub.s32 %s46, %s49
      %s52 = sor.u32 %s50, %s51
      %p53 = scmp.eq.s32.totalorder %s52, 0
      %s55 = sadd.s32 %s54, 1
      %s56 = scalar_select %p53, %s54, %s55
      %p59 = pneg %p53
      %p60 = scmp.eq.s32.totalorder %s17, 1
      %p61 = por %p59, %p60
      %p62 = scmp.ne.s32.totalorder %s54, %s57
      %p63 = scmp.eq.s32.totalorder %s17, 0
      %p64 = por %p62, %p63
      %p65 = scmp.ne.s32.totalorder %s54, %s57
      %p66 = scmp.eq.s32.totalorder %s22, 1
      %p67 = por %p65, %p66
      %p68 = scmp.ne.s32.totalorder %s57, %s58
      %p69 = scmp.eq.s32.totalorder %s22, 0
      %p70 = por %p68, %p69
      %p71 = scmp.ne.s32.totalorder %s57, %s58
      %p72 = scmp.eq.s32.totalorder %s23, 1
      %p73 = por %p71, %p72
      %p75 = scmp.ne.s32.totalorder %s58, %s74
      %p76 = scmp.eq.s32.totalorder %s23, 0
      %p77 = por %p75, %p76
      %s78 = sadd.s32 %s25, %s26
      %p79 = scmp.lt.s32.totalorder %s78, 0
      %s80 = scalar_select %p79, %s78, 0
      %s81 = sadd.s32 %s39, %s35
      %p82 = scmp.lt.s32.totalorder %s81, 0
      %s83 = scalar_select %p82, %s81, 0
      %s84 = ssub.s32 %s24, %s43
      %s85 = ssub.s32 %s80, %s83
      %s86 = sor.u32 %s84, %s85
      %p87 = scmp.eq.s32.totalorder %s86, 0
      %s89 = sadd.s32 %s88, 1
      %s90 = scalar_select %p87, %s88, %s89
      %p93 = pneg %p87
      %p94 = scmp.eq.s32.totalorder %s17, 1
      %p95 = por %p93, %p94
      %p96 = scmp.ne.s32.totalorder %s88, %s91
      %p97 = scmp.eq.s32.totalorder %s17, 0
      %p98 = por %p96, %p97
      %p99 = scmp.ne.s32.totalorder %s88, %s91
      %p100 = scmp.eq.s32.totalorder %s22, 1
      %p101 = por %p99, %p100
      %p102 = scmp.ne.s32.totalorder %s91, %s92
      %p103 = scmp.eq.s32.totalorder %s22, 0
      %p104 = por %p102, %p103
      %p105 = scmp.ne.s32.totalorder %s91, %s92
      %p106 = scmp.eq.s32.totalorder %s23, 1
      %p107 = por %p105, %p106
      %p109 = scmp.ne.s32.totalorder %s92, %s108
      %p110 = scmp.eq.s32.totalorder %s23, 0
      %p111 = por %p109, %p110
      %s112 = sadd.s32 %s24, %s25
      %s113 = sadd.s32 %s43, %s39
      %s114 = ssub.s32 %s112, %s113
      %p115 = scmp.eq.s32.totalorder %s114, 0
      %s117 = sadd.s32 %s116, 1
      %s118 = scalar_select %p115, %s116, %s117
      %p121 = pneg %p115
      %p122 = scmp.eq.s32.totalorder %s17, 1
      %p123 = por %p121, %p122
      %p124 = scmp.ne.s32.totalorder %s116, %s119
      %p125 = scmp.eq.s32.totalorder %s17, 0
      %p126 = por %p124, %p125
      %p127 = scmp.ne.s32.totalorder %s116, %s119
      %p128 = scmp.eq.s32.totalorder %s22, 1
      %p129 = por %p127, %p128
      %p130 = scmp.ne.s32.totalorder %s119, %s120
      %p131 = scmp.eq.s32.totalorder %s22, 0
      %p132 = por %p130, %p131
      %p133 = scmp.ne.s32.totalorder %s119, %s120
      %p134 = scmp.eq.s32.totalorder %s23, 1
      %p135 = por %p133, %p134
      %p137 = scmp.ne.s32.totalorder %s120, %s136
      %p138 = scmp.eq.s32.totalorder %s23, 0
      %p139 = por %p137, %p138
      %p140 = scmp.le.s32.totalorder 1, %s17
      %p141 = scmp.lt.s32.totalorder %s17, 3
      %p142 = pnand %p140, %p141
      %p143 = pneg %p142
      // Predicated region
      $region9: #{tpu_custom_call.1} parent=5 // pred_check
        _
      $region10: #{tpu_custom_call.1} parent=5 // pred_check_branch
        %145 = sbr.rel (%p142) target = $region12
      $region11: #{tpu_custom_call.1} parent=5 // pred_region
        %s146 = ssub.s32 %s17, 1
      $region12: #{tpu_custom_call.1} parent=5 // pred_fallthru
        _
      %p147 = scmp.lt.s32.totalorder %s17, 2
      // Predicated region
      $region13: #{tpu_custom_call.1} parent=5 // pred_check
        %p148 = pneg %p147
      $region14: #{tpu_custom_call.1} parent=5 // pred_check_branch
        %150 = sbr.rel (%p148) target = $region16
      $region15: #{tpu_custom_call.1} parent=5 // pred_region
        // Predicated region
        $region17: #{tpu_custom_call.1} parent=15 // pred_check
          %p151 = pneg %p64
        $region18: #{tpu_custom_call.1} parent=15 // pred_check_branch
          %153 = sbr.rel (%p151) target = $region20
        $region19: #{tpu_custom_call.1} parent=15 // pred_region
          %s154 = sand.u32 %s54, 1
          %s155 = scalar_lea.sflag [#allocation3], %s154
          %s156 = sand.u32 %s54, 1
          %s157 = smul.addr %s156, 8
          %s158 = scalar_lea.vmem [#allocation2], %s157
          %s159 = sadd.s32 %s25, %s26
          %p160 = scmp.lt.s32.totalorder %s159, 0
          %s161 = scalar_select %p160, %s159, 0
          %s162 = smul.u32 2, %s161
          %164 = vsyncadd %s155, 0
          %s165 = smul.addr %s24, 2
          %s166 = sadd.s32 %s162, %s165
          %s167 = smul.addr %s166, 4
          %s168 = scalar_lea.hbm %s0, %s167
          %s170 = sshll.u32 %s168, 4
          %s171 = int_to_ptr.hbm [resolvable:$true] %s170
          %s172 = sshll.u32 %s158, 4
          %s173 = int_to_ptr.vmem [resolvable:$true] %s172
          %175 = dma.hbm_to_vmem [thread:$0]  %s171, 128, %s173, %s155
        $region20: #{tpu_custom_call.1} parent=15 // pred_fallthru
          _
        // Predicated region
        $region21: #{tpu_custom_call.1} parent=15 // pred_check
          %p176 = pneg %p98
        $region22: #{tpu_custom_call.1} parent=15 // pred_check_branch
          %178 = sbr.rel (%p176) target = $region24
        $region23: #{tpu_custom_call.1} parent=15 // pred_region
          %s179 = sand.u32 %s88, 1
          %s180 = scalar_lea.sflag [#allocation6], %s179
          %s181 = sand.u32 %s88, 1
          %s182 = smul.addr %s181, 2
          %s183 = scalar_lea.vmem [#allocation5], %s182
          %s184 = sadd.s32 %s25, %s26
          %p185 = scmp.lt.s32.totalorder %s184, 0
          %s186 = scalar_select %p185, %s184, 0
          %s187 = smul.u32 2, %s186
          %189 = vsyncadd %s180, 0
          %s190 = smul.addr %s24, 2
          %s191 = sadd.s32 %s187, %s190
          %s192 = scalar_lea.hbm %s1, %s191
          %s194 = sshll.u32 %s192, 4
          %s195 = int_to_ptr.hbm [resolvable:$true] %s194
          %s196 = sshll.u32 %s183, 4
          %s197 = int_to_ptr.vmem [resolvable:$true] %s196
          %199 = dma.hbm_to_vmem [thread:$0]  %s195, 32, %s197, %s180
        $region24: #{tpu_custom_call.1} parent=15 // pred_fallthru
          _
      $region16: #{tpu_custom_call.1} parent=5 // pred_fallthru
        _
      %p200 = scmp.le.s32.totalorder 1, %s17
      %p201 = scmp.lt.s32.totalorder %s17, 3
      %p202 = pnand %p200, %p201
      %p203 = pneg %p202
      // Predicated region
      $region25: #{tpu_custom_call.1} parent=5 // pred_check
        _
      $region26: #{tpu_custom_call.1} parent=5 // pred_check_branch
        %205 = sbr.rel (%p202) target = $region28
      $region27: #{tpu_custom_call.1} parent=5 // pred_region
        %s206 = ssub.s32 %s17, 1
        %s207 = sand.u32 %s57, 1
        %s208 = scalar_lea.sflag [#allocation3], %s207
        %s209 = sand.u32 %s57, 1
        %s210 = smul.addr %s209, 8
        %s211 = scalar_lea.vmem [#allocation2], %s210
        // Predicated region
        $region29: #{tpu_custom_call.1} parent=27 // pred_check
          %p212 = pneg %p70
        $region30: #{tpu_custom_call.1} parent=27 // pred_check_branch
          %214 = sbr.rel (%p212) target = $region32
        $region31: #{tpu_custom_call.1} parent=27 // pred_region
          %216 = dma.done %s208, 128
        $region32: #{tpu_custom_call.1} parent=27 // pred_fallthru
          _
        %s217 = sand.u32 %s91, 1
        %s218 = scalar_lea.sflag [#allocation6], %s217
        %s219 = sand.u32 %s91, 1
        %s220 = smul.addr %s219, 2
        %s221 = scalar_lea.vmem [#allocation5], %s220
        // Predicated region
        $region33: #{tpu_custom_call.1} parent=27 // pred_check
          %p222 = pneg %p104
        $region34: #{tpu_custom_call.1} parent=27 // pred_check_branch
          %224 = sbr.rel (%p222) target = $region36
        $region35: #{tpu_custom_call.1} parent=27 // pred_region
          %226 = dma.done %s218, 32
        $region36: #{tpu_custom_call.1} parent=27 // pred_fallthru
          _
        %s227 = sand.u32 %s57, 1
        %s228 = scalar_lea.sflag [#allocation3], %s227
        %s229 = sand.u32 %s57, 1
        %s230 = smul.addr %s229, 8
        %s231 = scalar_lea.vmem [#allocation2], %s230
        %p232 = pneg %p70
        %p233 = pneg %p67
        %s234 = sand.u32 %s91, 1
        %s235 = scalar_lea.sflag [#allocation6], %s234
        %s236 = sand.u32 %s91, 1
        %s237 = smul.addr %s236, 2
        %s238 = scalar_lea.vmem [#allocation5], %s237
        %p239 = pneg %p104
        %p240 = pneg %p101
        %p241 = pneg %p132
        %p242 = pneg %p129
        %s243 = sand.u32 %s119, 1
        %s244 = scalar_lea.sflag [#allocation4], %s243
        %s245 = sand.u32 %s119, 1
        %s246 = smul.addr %s245, 2
        %s247 = scalar_lea.vmem [#allocation7], %s246
        %s248 = sadd.s32 %s28, %s29
        %p249 = scmp.lt.s32.totalorder %s248, 0
        %s250 = scalar_select %p249, %s248, 0
        %s251 = smul.u32 2, %s250
        %s252 = sadd.s32 %s28, %s29
        %p253 = scmp.lt.s32.totalorder %s252, 0
        %s254 = scalar_select %p253, %s252, 0
        %s255 = smul.u32 2, %s254
        %s256 = sadd.s32 %s27, %s28
        %p257 = scmp.eq.s32.totalorder %s29, 0
        // Predicated region
        $region37: #{tpu_custom_call.1} parent=27 // pred_check
          %p258 = pneg %p257
        $region38: #{tpu_custom_call.1} parent=27 // pred_check_branch
          %260 = sbr.rel (%p258) target = $region40
        $region39: #{tpu_custom_call.1} parent=27 // pred_region
          %v261 = vlaneseq
          %vm262 = vcmp.ge.s32.totalorder %v261, 0
          %vm263 = vcmp.lt.s32.totalorder %v261, 256
          %vm264 = vmand %vm262, %vm263
          %265 = vst.msk [vmem:[%s247] sm:$0x3] %vm264, 0.0
        $region40: #{tpu_custom_call.1} parent=27 // pred_fallthru
          _
        %v266 = vld [vmem:[%s211] sm:$0xff]
        %v267 = vld [vmem:[%s221] sm:$0x3]
        %s268 = sadd.s32 %s28, %s29
        %v269 = vlaneseq
        %v270 = vand.u32 %v269, 127
        %v271 = vadd.s32 %v270, 128
        %s272 = smul.u32 %s268, 256
        %v273 = vstv %s272
        %v274 = vadd.s32 %v273, %v270
        %v275 = vadd.s32 %v273, %v271
        %vm276 = vcmp.lt.s32.totalorder %v274, 256
        %vm277 = vcmp.lt.s32.totalorder %v275, 256
        %279 = vst [vmem:[#allocation1] ss:$2 sm:$0xff] %v266
        %v280 = vld.sshfl [vmem:[#allocation1] sm:$0xff pattern:$0x75316420]
        %v281 = vld.sshfl [vmem:[#allocation1 + $0x8] sm:$0xff pattern:$0x75316420]
        %vm284 = vcmask 1043456
        %v285 = vsel %vm284, %v280, -inf
        %v286 = vrot.slane %v285, 4
        %v287 = vmax.f32 %v285, %v286
        %v288 = vrot.slane %v287, 2
        %v289 = vmax.f32 %v287, %v288
        %v290 = vrot.slane %v289, 1
        %v291 = vmax.f32 %v289, %v290
        %v292 = vsel %vm284, %v281, -inf
        %v293 = vrot.slane %v292, 4
        %v294 = vmax.f32 %v292, %v293
        %v295 = vrot.slane %v294, 2
        %v296 = vmax.f32 %v294, %v295
        %v297 = vrot.slane %v296, 1
        %v298 = vmax.f32 %v296, %v297
        %v301 = vrot.slane %v298, 4
        %v302 = vsel %vm284, %v291, %v301
        %v304 = vsub.f32 %v266, %v302
        %v305 = vmul.f32 %v304, 1.442695
        %v306 = vpow.pop %v305
        %308 = vst [vmem:[#allocation1] ss:$2 sm:$0xff] %v306
        %v309 = vld.sshfl [vmem:[#allocation1] sm:$0xff pattern:$0x75316420]
        %v310 = vld.sshfl [vmem:[#allocation1 + $0x8] sm:$0xff pattern:$0x75316420]
        %v313 = vsel %vm284, %v309, 0.0
        %v314 = vrot.slane %v313, 4
        %v315 = vadd.f32 %v313, %v314
        %v316 = vrot.slane %v315, 2
        %v317 = vadd.f32 %v315, %v316
        %v318 = vrot.slane %v317, 1
        %v319 = vadd.f32 %v317, %v318
        %v320 = vsel %vm284, %v310, 0.0
        %v321 = vrot.slane %v320, 4
        %v322 = vadd.f32 %v320, %v321
        %v323 = vrot.slane %v322, 2
        %v324 = vadd.f32 %v322, %v323
        %v325 = vrot.slane %v324, 1
        %v326 = vadd.f32 %v324, %v325
        %v327 = vlog2.pop %v319
        %v328 = vmul.f32 %v327, 0.6931472
        %v329 = vlog2.pop %v326
        %v330 = vmul.f32 %v329, 0.6931472
        %v331 = vlaneseq
        %v332 = vshrl.u32 %v331, 7
        %v333 = vperm.slane %v267, 0
        %v334 = vperm.slane %v267, 1
        %vm335 = vcmp.eq.s32.totalorder %v332, %v333
        %vm336 = vcmp.eq.s32.totalorder %v332, %v334
        %337 = vst [vmem:[#allocation1] ss:$2 sm:$0xff] %v266
        %v338 = vld.sshfl [vmem:[#allocation1] sm:$0xff pattern:$0x75316420]
        %v339 = vld.sshfl [vmem:[#allocation1 + $0x8] sm:$0xff pattern:$0x75316420]
        %v342 = vsel %vm335, %v338, 0.0
        %v343 = vsel %vm336, %v339, 0.0
        %v344 = vsel %vm284, %v342, 0.0
        %v345 = vrot.slane %v344, 4
        %v346 = vadd.f32 %v344, %v345
        %v347 = vrot.slane %v346, 2
        %v348 = vadd.f32 %v346, %v347
        %v349 = vrot.slane %v348, 1
        %v350 = vadd.f32 %v348, %v349
        %v351 = vsel %vm284, %v343, 0.0
        %v352 = vrot.slane %v351, 4
        %v353 = vadd.f32 %v351, %v352
        %v354 = vrot.slane %v353, 2
        %v355 = vadd.f32 %v353, %v354
        %v356 = vrot.slane %v355, 1
        %v357 = vadd.f32 %v355, %v356
        %vm358 = vcmp.ge.s32.totalorder %v267, 0
        %vm359 = vcmp.lt.s32.totalorder %v267, 4
        %vm360 = vmand %vm358, %vm359
        %v361 = vsel %vm360, 1, 0
        %v362 = vcvt.s32.f32 %v361
        %v363 = vsub.f32 %v350, %v291
        %v364 = vsub.f32 %v357, %v298
        %v365 = vsub.f32 %v363, %v328
        %v366 = vsub.f32 %v364, %v330
        %v367 = vmax.f32 %v365, -18.420681
        %v368 = vmax.f32 %v366, -18.420681
        %v369 = vmin.f32 %v367, -1e-08
        %v370 = vmin.f32 %v368, -1e-08
        %v371 = vmul.f32 %v369, 1.442695
        %v372 = vpow.pop %v371
        %v373 = vmul.f32 %v370, 1.442695
        %v374 = vpow.pop %v373
        %v375 = vsub.f32 1.0, %v372
        %v376 = vsub.f32 1.0, %v374
        %v377 = vmul.f32 %v375, %v375
        %v378 = vmul.f32 %v376, %v376
        %v379 = vmax.f32 %v377, 0.0
        %v380 = vmax.f32 %v378, 0.0
        %v381 = vmin.f32 %v379, 2.0
        %v382 = vmin.f32 %v380, 2.0
        %v383 = vsub.f32 0.0, %v362
        %v386 = vrot.slane %v382, 7
        %vm387 = vcmask 1040384
        %v388 = vsel %vm387, %v381, %v386
        %v390 = vmul.f32 %v383, %v388
        %v393 = vrot.slane %v370, 7
        %v394 = vsel %vm387, %v369, %v393
        %v396 = vmul.f32 %v390, %v394
        %v397 = vld [vmem:[%s247] sm:$0x3]
        %v399 = vperm.slane %v396, 0
        %v400 = vperm.slane %v396, 1
        %v403 = vsel %vm276, %v399, 0.0
        %v404 = vsel %vm277, %v400, 0.0
        %v407 = vrot.slane %v404, 7
        %v408 = vsel %vm387, %v403, %v407
        %v410 = vadd.f32 %v397, %v408
        %v411 = vlaneseq
        %vm412 = vcmp.ge.s32.totalorder %v411, 0
        %vm413 = vcmp.lt.s32.totalorder %v411, 256
        %vm414 = vmand %vm412, %vm413
        %415 = vst.msk [vmem:[%s247] sm:$0x3] %vm414, %v410
        %s416 = sand.u32 %s119, 1
        %s417 = scalar_lea.sflag [#allocation4], %s416
        %s418 = sand.u32 %s119, 1
        %s419 = smul.addr %s418, 2
        %s420 = scalar_lea.vmem [#allocation7], %s419
        // Predicated region
        $region41: #{tpu_custom_call.1} parent=27 // pred_check
          %p421 = pneg %p129
        $region42: #{tpu_custom_call.1} parent=27 // pred_check_branch
          %423 = sbr.rel (%p421) target = $region44
        $region43: #{tpu_custom_call.1} parent=27 // pred_region
          %s424 = sadd.s32 %s27, %s28
          %426 = vsyncadd %s417, 0
          %s427 = smul.addr %s424, 2
          %s428 = scalar_lea.hbm %s2, %s427
          %s430 = sshll.u32 %s420, 4
          %s431 = int_to_ptr.vmem [resolvable:$true] %s430
          %s432 = sshll.u32 %s428, 4
          %s433 = int_to_ptr.hbm [resolvable:$true] %s432
          %435 = dma.vmem_to_hbm [thread:$0]  %s431, 32, %s433, %s417
        $region44: #{tpu_custom_call.1} parent=27 // pred_fallthru
          _
      $region28: #{tpu_custom_call.1} parent=5 // pred_fallthru
        _
      %p436 = scmp.le.s32.totalorder 2, %s17
      // Predicated region
      $region45: #{tpu_custom_call.1} parent=5 // pred_check
        %p437 = pneg %p436
      $region46: #{tpu_custom_call.1} parent=5 // pred_check_branch
        %439 = sbr.rel (%p437) target = $region48
      $region47: #{tpu_custom_call.1} parent=5 // pred_region
        %s440 = ssub.s32 %s17, 2
        // Predicated region
        $region49: #{tpu_custom_call.1} parent=47 // pred_check
          %p441 = pneg %p135
        $region50: #{tpu_custom_call.1} parent=47 // pred_check_branch
          %443 = sbr.rel (%p441) target = $region52
        $region51: #{tpu_custom_call.1} parent=47 // pred_region
          %s444 = sand.u32 %s120, 1
          %s445 = scalar_lea.sflag [#allocation4], %s444
          %s446 = sand.u32 %s120, 1
          %s447 = smul.addr %s446, 2
          %s448 = scalar_lea.vmem [#allocation7], %s447
          %450 = dma.done %s445, 32
        $region52: #{tpu_custom_call.1} parent=47 // pred_fallthru
          _
      $region48: #{tpu_custom_call.1} parent=5 // pred_fallthru
        _
    $region6: #{tpu_custom_call.1} parent=1 // loop_footer
      %s21 = sadd.s32 1, %s17
    $region7: #{tpu_custom_call.1} parent=1 // loop_footer_branch
      %16 = sbr.rel target = $region3
    $region8: #{tpu_custom_call.1} parent=1 // loop_exit
      _
    %451 = vsyncpa [#allocation3], 1
    %s452 = scalar_lea.sflag [#allocation3], 1
    %453 = vsyncpa %s452, 1
    %454 = vsyncpa [#allocation6], 1
    %s455 = scalar_lea.sflag [#allocation6], 1
    %456 = vsyncpa %s455, 1
    %457 = vsyncpa [#allocation4], 1
    %s458 = scalar_lea.sflag [#allocation4], 1
    %459 = vsyncpa %s458, 1

</llo_original>
